<compile_context>
chip_gen: v7x
topology: tpu7x:2x2x1
jax: 0.10.0
libtpu: 0.0.40
codegen_flags: <defaults>
</compile_context>

<pallas_src>
import functools

import jax
import jax.numpy as jnp
from jax.experimental import pallas as pl
from jax.experimental.pallas import tpu as pltpu

# Synthetic, small sizes consistent with the module's forward
VOCAB_SIZE = 512
N_CLASSES = 8
BATCH = 8


def _round_up(x, m):
    return (x + m - 1) // m * m


def _lexicon_kernel(x_ref, w_ref, off_ref, y_ref, logits_ref, loss_ref, *,
                    use_dev, n_rows):
    """One batch tile: full-V matmul + offset + fused softmax cross-entropy.

    x_ref:      (tn, V)  matmul dtype (bf16 default; x is 0/1 so exact)
    w_ref:      (V, C)   matmul dtype (constant index_map -> DMA'd once)
    off_ref:    (1, C)   bias                       (standard path)   OR
                (tn, C)  label_distribution         (deviation path; log here)
    y_ref:      (tn, 1)  int32 class ids
    logits_ref: (tn, C)  f32
    loss_ref:   (tn, 1)  f32 per-row loss (0 for alignment-padded rows)
    """
    tn = x_ref.shape[0]
    c = w_ref.shape[1]

    # (tn, V) @ (V, C), f32 accumulation on the MXU.
    logits = jnp.dot(x_ref[...], w_ref[...], preferred_element_type=jnp.float32)

    off = off_ref[...].astype(jnp.float32)
    if use_dev:
        off = jnp.log(off)  # EUP slot; matches torch.log(label_distribution)
    logits = logits + off
    logits_ref[...] = logits.astype(logits_ref.dtype)

    # Softmax cross-entropy.  Label pick via lane iota compare (no one-hot
    # stream from HBM; -inf logits in non-picked classes cannot NaN).
    m = jnp.max(logits, axis=-1, keepdims=True)
    lse = m + jnp.log(jnp.sum(jnp.exp(logits - m), axis=-1, keepdims=True))
    col = jax.lax.broadcasted_iota(jnp.int32, (tn, c), 1)
    picked = jnp.sum(jnp.where(col == y_ref[...], logits, 0.0),
                     axis=-1, keepdims=True)

    # Mask rows beyond the real batch (only the <8-row sublane alignment pad
    # and/or a partial last tile); the wrapper then does sum / n.
    row = (jax.lax.broadcasted_iota(jnp.int32, (tn, 1), 0)
           + pl.program_id(0) * tn)
    loss_ref[...] = jnp.where(row < n_rows, lse - picked, 0.0)


@functools.partial(
    jax.jit,
    static_argnames=("use_label_distribution_deviation", "matmul_dtype",
                     "tile_rows"))
def lexicon_forward(x, y, weight_vc, bias_c=None, label_distribution=None,
                    use_label_distribution_deviation=False,
                    matmul_dtype=jnp.bfloat16, tile_rows=512):
    """JAX glue around the Pallas kernel.

    x: (N, V) float "bag-of-words", y: (N,) int class ids,
    weight_vc: (V, C) float (transpose of PyTorch's (C, V) nn.Linear weight),
    bias_c: (C,) float (used only when deviation flag is off, like the module),
    label_distribution: (N, C) float (used only when the flag is on).
    """
    n, v = x.shape
    c = weight_vc.shape[1]

    n8 = _round_up(n, 8)                 # sublane alignment only (usually n)
    tn = _round_up(min(int(tile_rows), n8), 8)
    grid = (pl.cdiv(n8, tn),)

    def pad_rows(a, fill=0):
        if a.shape[0] == n8:
            return a
        pad = jnp.full((n8 - a.shape[0],) + a.shape[1:], fill, a.dtype)
        return jnp.concatenate([a, pad], axis=0)

    x_p = pad_rows(x.astype(matmul_dtype))                    # dominant stream
    w_p = weight_vc.astype(matmul_dtype)                      # (V, C), resident
    y_p = pad_rows(y.astype(jnp.int32).reshape(n, 1))         # (n8, 1)

    if use_label_distribution_deviation:
        # Linear has no bias in this mode (matches the module).
        off = pad_rows(label_distribution.astype(jnp.float32), fill=1.0)
        off_spec = pl.BlockSpec((tn, c), lambda i: (i, 0))
    else:
        off = bias_c.astype(jnp.float32).reshape(1, c)
        off_spec = pl.BlockSpec((1, c), lambda i: (0, 0))

    kernel = functools.partial(_lexicon_kernel,
                               use_dev=use_label_distribution_deviation,
                               n_rows=n)

    logits_p, loss_p = pl.pallas_call(
        kernel,
        out_shape=(jax.ShapeDtypeStruct((n8, c), jnp.float32),
                   jax.ShapeDtypeStruct((n8, 1), jnp.float32)),
        grid_spec=pltpu.PrefetchScalarGridSpec(
            num_scalar_prefetch=0,
            grid=grid,
            in_specs=[
                pl.BlockSpec((tn, v), lambda i: (i, 0)),   # x rows
                pl.BlockSpec((v, c), lambda i: (0, 0)),    # W (resident)
                off_spec,                                  # bias / label dist
                pl.BlockSpec((tn, 1), lambda i: (i, 0)),   # labels
            ],
            out_specs=(
                pl.BlockSpec((tn, c), lambda i: (i, 0)),   # logits (width C)
                pl.BlockSpec((tn, 1), lambda i: (i, 0)),   # per-row loss
            ),
        ),
        compiler_params=pltpu.CompilerParams(
            dimension_semantics=("parallel",)),            # megacore on v7x
    )(x_p, w_p, off, y_p)

    logits = logits_p if n == n8 else logits_p[:n]
    loss = jnp.sum(loss_p) / n            # global mean over real rows only
    return {"logits": logits, "loss": loss, "labels": y}


if __name__ == "__main__":
    key = jax.random.PRNGKey(0)
    kx, kw, kb, ky, kl = jax.random.split(key, 5)

    # deterministic synthetic "bag-of-words" inputs and linear params
    x = (jax.random.uniform(kx, (BATCH, VOCAB_SIZE)) < 0.05).astype(jnp.float32)
    weight_vc = (0.02 * jax.random.normal(kw, (VOCAB_SIZE, N_CLASSES))
                 ).astype(jnp.float32)                     # (V, C) == PyTorch W.T
    bias_c = (0.01 * jax.random.normal(kb, (N_CLASSES,))).astype(jnp.float32)
    y = jax.random.randint(ky, (BATCH,), 0, N_CLASSES).astype(jnp.int32)
    label_distribution = jax.nn.softmax(
        jax.random.normal(kl, (BATCH, N_CLASSES)), axis=-1).astype(jnp.float32)

    def ref_ce(logits, labels):
        lse = jax.scipy.special.logsumexp(logits, axis=-1)
        picked = jnp.take_along_axis(logits, labels[:, None], axis=-1)[:, 0]
        return jnp.mean(lse - picked)

    ref_logits = x @ weight_vc + bias_c
    ref_logits_dev = x @ weight_vc + jnp.log(label_distribution)

    # 1) standard path, f32 matmul (strict check vs plain-JAX reference)
    out = lexicon_forward(x, y, weight_vc, bias_c,
                          matmul_dtype=jnp.float32, tile_rows=8)
    jax.block_until_ready(out)
    assert jnp.allclose(out["logits"], ref_logits, atol=1e-5)
    assert jnp.allclose(out["loss"], ref_ce(ref_logits, y), atol=1e-5)

    # 2) label-distribution-deviation path (Linear has no bias), f32
    out_dev = lexicon_forward(x, y, weight_vc, None, label_distribution,
                              use_label_distribution_deviation=True,
                              matmul_dtype=jnp.float32, tile_rows=8)
    jax.block_until_ready(out_dev)
    assert jnp.allclose(out_dev["logits"], ref_logits_dev, atol=1e-5)
    assert jnp.allclose(out_dev["loss"], ref_ce(ref_logits_dev, y), atol=1e-5)

    # 3) bf16 matmul operands (default; x is 0/1 so exact — error only from
    #    the bf16 W cast, acceptable per tolerance).
    out_bf16 = lexicon_forward(x, y, weight_vc, bias_c, tile_rows=8)
    jax.block_until_ready(out_bf16)
    assert jnp.allclose(out_bf16["logits"], ref_logits, atol=2e-2)
    assert jnp.allclose(out_bf16["loss"], ref_ce(ref_logits, y), atol=2e-2)

    # 4) multi-tile grid + in-kernel row masking (n not a multiple of the tile)
    n2 = 20
    x2 = (jax.random.uniform(kx, (n2, VOCAB_SIZE)) < 0.05).astype(jnp.float32)
    y2 = jax.random.randint(ky, (n2,), 0, N_CLASSES).astype(jnp.int32)
    out2 = lexicon_forward(x2, y2, weight_vc, bias_c,
                           matmul_dtype=jnp.float32, tile_rows=8)
    jax.block_until_ready(out2)
    ref_logits2 = x2 @ weight_vc + bias_c
    assert out2["logits"].shape == (n2, N_CLASSES)
    assert jnp.allclose(out2["logits"], ref_logits2, atol=1e-5)
    assert jnp.allclose(out2["loss"], ref_ce(ref_logits2, y2), atol=1e-5)

    # TODO(synk): only the standard softmax cross-entropy MULTICLASS_STRATEGY
    # is implemented (no one-vs-rest / BCE variants); get_weighted_lexicon
    # (pandas export) is host-side and not a kernel.
    print("KERNEL_OK")
</pallas_src>

<mosaic_0001>
module attributes {stable_mosaic.version = 11 : i64} {
  func.func @_lexicon_kernel(%arg0: i32, %arg1: memref<8x512xf32, #tpu.memory_space<vmem>>, %arg2: memref<512x8xf32, #tpu.memory_space<vmem>>, %arg3: memref<1x8xf32, #tpu.memory_space<vmem>>, %arg4: memref<8x1xi32, #tpu.memory_space<vmem>>, %arg5: memref<8x8xf32, #tpu.memory_space<vmem>>, %arg6: memref<8x1xf32, #tpu.memory_space<vmem>>) attributes {dimension_semantics = [#tpu.dimension_semantics<parallel>], iteration_bounds = array<i64: 1>, scalar_prefetch = 0 : i64, scratch_operands = 0 : i64, tpu.core_type = #tpu.core_type<tc>, window_params = [{transform_indices = @transform_0, window_bounds = array<i64: 8, 512>}, {pipeline_mode = #tpu.pipeline_mode<synchronous>, transform_indices = @transform_1, window_bounds = array<i64: 512, 8>}, {pipeline_mode = #tpu.pipeline_mode<synchronous>, transform_indices = @transform_2, window_bounds = array<i64: 1, 8>}, {transform_indices = @transform_3, window_bounds = array<i64: 8, 1>}, {transform_indices = @transform_4, window_bounds = array<i64: 8, 8>}, {transform_indices = @transform_5, window_bounds = array<i64: 8, 1>}]} {
    %c0 = arith.constant 0 : index
    %c0_0 = arith.constant 0 : index
    %0 = vector.load %arg1[%c0, %c0_0] : memref<8x512xf32, #tpu.memory_space<vmem>>, vector<8x512xf32>
    %c0_1 = arith.constant 0 : index
    %c0_2 = arith.constant 0 : index
    %1 = vector.load %arg2[%c0_1, %c0_2] : memref<512x8xf32, #tpu.memory_space<vmem>>, vector<512x8xf32>
    %cst = arith.constant dense<0.000000e+00> : vector<8x8xf32>
    %2 = tpu.matmul %0, %1, %cst {dimension_numbers = #tpu.dot_dimension_numbers<[1], [0], [0], [1], [0, 0, 1, 1], [], []>} : vector<8x512xf32>, vector<512x8xf32>, vector<8x8xf32> -> vector<8x8xf32>
    %c0_3 = arith.constant 0 : index
    %c0_4 = arith.constant 0 : index
    %3 = vector.load %arg3[%c0_3, %c0_4] : memref<1x8xf32, #tpu.memory_space<vmem>>, vector<1x8xf32>
    %4 = vector.broadcast %3 : vector<1x8xf32> to vector<8x8xf32>
    %5 = arith.addf %2, %4 : vector<8x8xf32>
    %c0_5 = arith.constant 0 : index
    %c0_6 = arith.constant 0 : index
    %6 = vector.load %arg5[%c0_5, %c0_6] : memref<8x8xf32, #tpu.memory_space<vmem>>, vector<8x8xf32>
    tpu.vector_store %arg5[%c0_5, %c0_6], %5 {strides = array<i32>} : memref<8x8xf32, #tpu.memory_space<vmem>>, vector<8x8xf32>,
    %cst_7 = arith.constant dense<0xFF800000> : vector<8xf32>
    %7 = vector.multi_reduction <maximumf>, %5, %cst_7 [1] : vector<8x8xf32> to vector<8xf32>
    %8 = vector.shape_cast %7 : vector<8xf32> to vector<8x1xf32>
    %9 = vector.broadcast %8 : vector<8x1xf32> to vector<8x8xf32>
    %10 = arith.subf %5, %9 : vector<8x8xf32>
    %11 = math.exp %10 : vector<8x8xf32>
    %cst_8 = arith.constant dense<0.000000e+00> : vector<8xf32>
    %12 = vector.multi_reduction <add>, %11, %cst_8 [1] : vector<8x8xf32> to vector<8xf32>
    %13 = vector.shape_cast %12 : vector<8xf32> to vector<8x1xf32>
    %14 = math.log %13 : vector<8x1xf32>
    %15 = arith.addf %8, %14 : vector<8x1xf32>
    %16 = tpu.iota {dimensions = array<i32: 1>} : vector<8x8xi32>
    %c0_9 = arith.constant 0 : index
    %c0_10 = arith.constant 0 : index
    %17 = vector.load %arg4[%c0_9, %c0_10] : memref<8x1xi32, #tpu.memory_space<vmem>>, vector<8x1xi32>
    %18 = vector.broadcast %17 : vector<8x1xi32> to vector<8x8xi32>
    %19 = arith.cmpi eq, %16, %18 : vector<8x8xi32>
    %cst_11 = arith.constant 0.000000e+00 : f32
    %20 = vector.broadcast %cst_11 : f32 to vector<8x8xf32>
    %21 = arith.select %19, %5, %20 : vector<8x8xi1>, vector<8x8xf32>
    %cst_12 = arith.constant dense<0.000000e+00> : vector<8xf32>
    %22 = vector.multi_reduction <add>, %21, %cst_12 [1] : vector<8x8xf32> to vector<8xf32>
    %23 = vector.shape_cast %22 : vector<8xf32> to vector<8x1xf32>
    %24 = tpu.iota {dimensions = array<i32: 0>} : vector<8x1xi32>
    %c8_i32 = arith.constant 8 : i32
    %25 = arith.muli %arg0, %c8_i32 : i32
    %26 = vector.broadcast %25 : i32 to vector<8x1xi32>
    %27 = arith.addi %24, %26 : vector<8x1xi32>
    %c8_i32_13 = arith.constant 8 : i32
    %28 = vector.broadcast %c8_i32_13 : i32 to vector<8x1xi32>
    %29 = arith.cmpi slt, %27, %28 : vector<8x1xi32>
    %30 = arith.subf %15, %23 : vector<8x1xf32>
    %cst_14 = arith.constant 0.000000e+00 : f32
    %31 = vector.broadcast %cst_14 : f32 to vector<8x1xf32>
    %32 = arith.select %29, %30, %31 : vector<8x1xi1>, vector<8x1xf32>
    %c0_15 = arith.constant 0 : index
    %c0_16 = arith.constant 0 : index
    %33 = vector.load %arg6[%c0_15, %c0_16] : memref<8x1xf32, #tpu.memory_space<vmem>>, vector<8x1xf32>
    tpu.vector_store %arg6[%c0_15, %c0_16], %32 {strides = array<i32>} : memref<8x1xf32, #tpu.memory_space<vmem>>, vector<8x1xf32>,
    return
  }
  func.func @transform_0(%arg0: i32) -> (i32, i32) {
    %c0_i32 = arith.constant 0 : i32
    %c0_i32_0 = arith.constant 0 : i32
    return %arg0, %c0_i32 : i32, i32
  }
  func.func @transform_1(%arg0: i32) -> (i32, i32) {
    %c0_i32 = arith.constant 0 : i32
    %c0_i32_0 = arith.constant 0 : i32
    %c0_i32_1 = arith.constant 0 : i32
    return %c0_i32, %c0_i32_0 : i32, i32
  }
  func.func @transform_2(%arg0: i32) -> (i32, i32) {
    %c0_i32 = arith.constant 0 : i32
    %c0_i32_0 = arith.constant 0 : i32
    %c0_i32_1 = arith.constant 0 : i32
    return %c0_i32, %c0_i32_0 : i32, i32
  }
  func.func @transform_3(%arg0: i32) -> (i32, i32) {
    %c0_i32 = arith.constant 0 : i32
    %c0_i32_0 = arith.constant 0 : i32
    return %arg0, %c0_i32 : i32, i32
  }
  func.func @transform_4(%arg0: i32) -> (i32, i32) {
    %c0_i32 = arith.constant 0 : i32
    %c0_i32_0 = arith.constant 0 : i32
    return %arg0, %c0_i32 : i32, i32
  }
  func.func @transform_5(%arg0: i32) -> (i32, i32) {
    %c0_i32 = arith.constant 0 : i32
    %c0_i32_0 = arith.constant 0 : i32
    return %arg0, %c0_i32 : i32, i32
  }
}

</mosaic_0001>

<llo_original>
// kernel: lexicon_forward.1
$region0: #{lexicon_forward.1}
  #allocation0 [shape = 'u32[]', space=smem, size = 0x4, offset = 0x4, fixed_abs, tag = 'smem constant byte address 0x4 - core index']
  #allocation1 [shape = 'u32[144,128]{1,0:T(1,128)}', space=vmem, size = 0x12000, scoped, tag = 'internal scratch']
  %s0 = inlined_call_operand.vmem [shape: f32[8,512], index: 0, kind: input, shape index: {}]
  %s1 = inlined_call_operand.vmem [shape: f32[512,8], index: 1, kind: input, shape index: {}]
  %s2 = inlined_call_operand.vmem [shape: f32[1,8], index: 2, kind: input, shape index: {}]
  %s3 = inlined_call_operand.vmem [shape: s32[8,1], index: 3, kind: input, shape index: {}]
  %s4 = inlined_call_operand.hbm [shape: f32[8,8], index: 4, kind: output, shape index: {0}]
  %s5 = inlined_call_operand.vmem [shape: f32[8,1], index: 5, kind: output, shape index: {1}]
  %6 = xla_tuple %s4, %s5
  %s7 = sld [smem:[#allocation0]]
  $region34: #{lexicon_forward.1} parent=0
    _
  %s9 = ssub.s32 1, %s7
  %s10 = scalar_select 0, %s9, %s7
  $region1: #{lexicon_forward.1} parent=0
    #allocation2 [shape = 'u8[4096]{0}', space=vmem, size = 0x1000, scoped, tag = 'output window, operand 0, single buffered']
    #allocation3 [shape = 's32[1]{0}', space=sflag, size = 0x4, scoped, tag = 'scoped memory for lexicon_forward.1']
    %11 = vsyncpa [#allocation3], 0
    // Predicated region
    $region2: #{lexicon_forward.1} parent=1 // pred_check
      _
    $region3: #{lexicon_forward.1} parent=1 // pred_check_branch
      %13 = sbr.rel (0) target = $region5
    $region4: #{lexicon_forward.1} parent=1 // pred_region
      _
    $region5: #{lexicon_forward.1} parent=1 // pred_fallthru
      _
    // Predicated region
    $region6: #{lexicon_forward.1} parent=1 // pred_check
      _
    $region7: #{lexicon_forward.1} parent=1 // pred_check_branch
      %15 = sbr.rel (0) target = $region9
    $region8: #{lexicon_forward.1} parent=1 // pred_region
      _
    $region9: #{lexicon_forward.1} parent=1 // pred_fallthru
      _
    // Predicated region
    $region10: #{lexicon_forward.1} parent=1 // pred_check
      _
    $region11: #{lexicon_forward.1} parent=1 // pred_check_branch
      %17 = sbr.rel (0) target = $region13
    $region12: #{lexicon_forward.1} parent=1 // pred_region
      _
    $region13: #{lexicon_forward.1} parent=1 // pred_fallthru
      _
    // Predicated region
    $region14: #{lexicon_forward.1} parent=1 // pred_check
      _
    $region15: #{lexicon_forward.1} parent=1 // pred_check_branch
      %19 = sbr.rel (0) target = $region17
    $region16: #{lexicon_forward.1} parent=1 // pred_region
      _
    $region17: #{lexicon_forward.1} parent=1 // pred_fallthru
      _
    %v20 = vld [vmem:[%s0] sm:$0xff]
    %v21 = vld [vmem:[%s0 + $0x8] sm:$0xff]
    %v22 = vld [vmem:[%s0 + $0x10] sm:$0xff]
    %v23 = vld [vmem:[%s0 + $0x18] sm:$0xff]
    %v24 = vld [vmem:[%s1] sm:$0xff]
    %v25 = vld [vmem:[%s1 + $0x8] sm:$0xff]
    %v26 = vld [vmem:[%s1 + $0x10] sm:$0xff]
    %v27 = vld [vmem:[%s1 + $0x18] sm:$0xff]
    %v28 = vld [vmem:[%s1 + $0x20] sm:$0xff]
    %v29 = vld [vmem:[%s1 + $0x28] sm:$0xff]
    %v30 = vld [vmem:[%s1 + $0x30] sm:$0xff]
    %v31 = vld [vmem:[%s1 + $0x38] sm:$0xff]
    %v32 = vld [vmem:[%s1 + $0x40] sm:$0xff]
    %v33 = vld [vmem:[%s1 + $0x48] sm:$0xff]
    %v34 = vld [vmem:[%s1 + $0x50] sm:$0xff]
    %v35 = vld [vmem:[%s1 + $0x58] sm:$0xff]
    %v36 = vld [vmem:[%s1 + $0x60] sm:$0xff]
    %v37 = vld [vmem:[%s1 + $0x68] sm:$0xff]
    %v38 = vld [vmem:[%s1 + $0x70] sm:$0xff]
    %v39 = vld [vmem:[%s1 + $0x78] sm:$0xff]
    %v40 = vld [vmem:[%s1 + $0x80] sm:$0xff]
    %v41 = vld [vmem:[%s1 + $0x88] sm:$0xff]
    %v42 = vld [vmem:[%s1 + $0x90] sm:$0xff]
    %v43 = vld [vmem:[%s1 + $0x98] sm:$0xff]
    %v44 = vld [vmem:[%s1 + $0xa0] sm:$0xff]
    %v45 = vld [vmem:[%s1 + $0xa8] sm:$0xff]
    %v46 = vld [vmem:[%s1 + $0xb0] sm:$0xff]
    %v47 = vld [vmem:[%s1 + $0xb8] sm:$0xff]
    %v48 = vld [vmem:[%s1 + $0xc0] sm:$0xff]
    %v49 = vld [vmem:[%s1 + $0xc8] sm:$0xff]
    %v50 = vld [vmem:[%s1 + $0xd0] sm:$0xff]
    %v51 = vld [vmem:[%s1 + $0xd8] sm:$0xff]
    %v52 = vld [vmem:[%s1 + $0xe0] sm:$0xff]
    %v53 = vld [vmem:[%s1 + $0xe8] sm:$0xff]
    %v54 = vld [vmem:[%s1 + $0xf0] sm:$0xff]
    %v55 = vld [vmem:[%s1 + $0xf8] sm:$0xff]
    %v56 = vld [vmem:[%s1 + $0x100] sm:$0xff]
    %v57 = vld [vmem:[%s1 + $0x108] sm:$0xff]
    %v58 = vld [vmem:[%s1 + $0x110] sm:$0xff]
    %v59 = vld [vmem:[%s1 + $0x118] sm:$0xff]
    %v60 = vld [vmem:[%s1 + $0x120] sm:$0xff]
    %v61 = vld [vmem:[%s1 + $0x128] sm:$0xff]
    %v62 = vld [vmem:[%s1 + $0x130] sm:$0xff]
    %v63 = vld [vmem:[%s1 + $0x138] sm:$0xff]
    %v64 = vld [vmem:[%s1 + $0x140] sm:$0xff]
    %v65 = vld [vmem:[%s1 + $0x148] sm:$0xff]
    %v66 = vld [vmem:[%s1 + $0x150] sm:$0xff]
    %v67 = vld [vmem:[%s1 + $0x158] sm:$0xff]
    %v68 = vld [vmem:[%s1 + $0x160] sm:$0xff]
    %v69 = vld [vmem:[%s1 + $0x168] sm:$0xff]
    %v70 = vld [vmem:[%s1 + $0x170] sm:$0xff]
    %v71 = vld [vmem:[%s1 + $0x178] sm:$0xff]
    %v72 = vld [vmem:[%s1 + $0x180] sm:$0xff]
    %v73 = vld [vmem:[%s1 + $0x188] sm:$0xff]
    %v74 = vld [vmem:[%s1 + $0x190] sm:$0xff]
    %v75 = vld [vmem:[%s1 + $0x198] sm:$0xff]
    %v76 = vld [vmem:[%s1 + $0x1a0] sm:$0xff]
    %v77 = vld [vmem:[%s1 + $0x1a8] sm:$0xff]
    %v78 = vld [vmem:[%s1 + $0x1b0] sm:$0xff]
    %v79 = vld [vmem:[%s1 + $0x1b8] sm:$0xff]
    %v80 = vld [vmem:[%s1 + $0x1c0] sm:$0xff]
    %v81 = vld [vmem:[%s1 + $0x1c8] sm:$0xff]
    %v82 = vld [vmem:[%s1 + $0x1d0] sm:$0xff]
    %v83 = vld [vmem:[%s1 + $0x1d8] sm:$0xff]
    %v84 = vld [vmem:[%s1 + $0x1e0] sm:$0xff]
    %v85 = vld [vmem:[%s1 + $0x1e8] sm:$0xff]
    %v86 = vld [vmem:[%s1 + $0x1f0] sm:$0xff]
    %v87 = vld [vmem:[%s1 + $0x1f8] sm:$0xff]
    %v88 = vld [vmem:[%s2] sm:$0x1]
    %v90 = vlaneseq
    %v91 = vshrl.u32 %v90, 7
    %v92 = vsub.s32 0, %v91
    %v93 = vrot.slane %v88, %v92
    %95 = vmatprep.subr.mxu0 0.0
    %96 = vmatpush1.msra.mxu0 %v24
    %97 = vmatprep.subr.mxu0 0.0
    %98 = vmatpush1.msra.mxu0 %v25
    %99 = vmatprep.subr.mxu0 0.0
    %100 = vmatpush1.msra.mxu0 %v26
    %101 = vmatprep.subr.mxu0 0.0
    %102 = vmatpush1.msra.mxu0 %v27
    %103 = vmatprep.subr.mxu0 0.0
    %104 = vmatpush1.msra.mxu0 %v28
    %105 = vmatprep.subr.mxu0 0.0
    %106 = vmatpush1.msra.mxu0 %v29
    %107 = vmatprep.subr.mxu0 0.0
    %108 = vmatpush1.msra.mxu0 %v30
    %109 = vmatprep.subr.mxu0 0.0
    %110 = vmatpush1.msra.mxu0 %v31
    %111 = vmatprep.subr.mxu0 0.0
    %112 = vmatpush1.msra.mxu0 %v32
    %113 = vmatprep.subr.mxu0 0.0
    %114 = vmatpush1.msra.mxu0 %v33
    %115 = vmatprep.subr.mxu0 0.0
    %116 = vmatpush1.msra.mxu0 %v34
    %117 = vmatprep.subr.mxu0 0.0
    %118 = vmatpush1.msra.mxu0 %v35
    %119 = vmatprep.subr.mxu0 0.0
    %120 = vmatpush1.msra.mxu0 %v36
    %121 = vmatprep.subr.mxu0 0.0
    %122 = vmatpush1.msra.mxu0 %v37
    %123 = vmatprep.subr.mxu0 0.0
    %124 = vmatpush1.msra.mxu0 %v38
    %125 = vmatprep.subr.mxu0 0.0
    %126 = vmatpush1.msra.mxu0 %v39
    %127 = vmatprep.subr.mxu0 0.0
    %128 = vmatpush1.msra.mxu0 %v40
    %129 = vmatprep.subr.mxu0 0.0
    %130 = vmatpush1.msra.mxu0 %v41
    %131 = vmatprep.subr.mxu0 0.0
    %132 = vmatpush1.msra.mxu0 %v42
    %133 = vmatprep.subr.mxu0 0.0
    %134 = vmatpush1.msra.mxu0 %v43
    %135 = vmatprep.subr.mxu0 0.0
    %136 = vmatpush1.msra.mxu0 %v44
    %137 = vmatprep.subr.mxu0 0.0
    %138 = vmatpush1.msra.mxu0 %v45
    %139 = vmatprep.subr.mxu0 0.0
    %140 = vmatpush1.msra.mxu0 %v46
    %141 = vmatprep.subr.mxu0 0.0
    %142 = vmatpush1.msra.mxu0 %v47
    %143 = vmatprep.subr.mxu0 0.0
    %144 = vmatpush1.msra.mxu0 %v48
    %145 = vmatprep.subr.mxu0 0.0
    %146 = vmatpush1.msra.mxu0 %v49
    %147 = vmatprep.subr.mxu0 0.0
    %148 = vmatpush1.msra.mxu0 %v50
    %149 = vmatprep.subr.mxu0 0.0
    %150 = vmatpush1.msra.mxu0 %v51
    %151 = vmatprep.subr.mxu0 0.0
    %152 = vmatpush1.msra.mxu0 %v52
    %153 = vmatprep.subr.mxu0 0.0
    %154 = vmatpush1.msra.mxu0 %v53
    %155 = vmatprep.subr.mxu0 0.0
    %156 = vmatpush1.msra.mxu0 %v54
    %157 = vmatprep.subr.mxu0 0.0
    %158 = vmatpush1.msra.mxu0 %v55
    %159 = vmatprep.mubr.f32.mxu0 %v21
    %160 = vmatmul.mubr.f32.gmra.mrb[0].mxu0 %v20
    %v161 = vpop.f32.mrb[0].mxu0
    %v162 = vadd.f32 %v93, %v161
    %v163 = vpop.f32.mrb[0].mxu0
    %164 = vdwg.mxu0
    %165 = vmatprep.subr.mxu0 0.0
    %166 = vmatpush1.msra.mxu0 %v56
    %167 = vmatprep.subr.mxu0 0.0
    %168 = vmatpush1.msra.mxu0 %v57
    %169 = vmatprep.subr.mxu0 0.0
    %170 = vmatpush1.msra.mxu0 %v58
    %171 = vmatprep.subr.mxu0 0.0
    %172 = vmatpush1.msra.mxu0 %v59
    %173 = vmatprep.subr.mxu0 0.0
    %174 = vmatpush1.msra.mxu0 %v60
    %175 = vmatprep.subr.mxu0 0.0
    %176 = vmatpush1.msra.mxu0 %v61
    %177 = vmatprep.subr.mxu0 0.0
    %178 = vmatpush1.msra.mxu0 %v62
    %179 = vmatprep.subr.mxu0 0.0
    %180 = vmatpush1.msra.mxu0 %v63
    %181 = vmatprep.subr.mxu0 0.0
    %182 = vmatpush1.msra.mxu0 %v64
    %183 = vmatprep.subr.mxu0 0.0
    %184 = vmatpush1.msra.mxu0 %v65
    %185 = vmatprep.subr.mxu0 0.0
    %186 = vmatpush1.msra.mxu0 %v66
    %187 = vmatprep.subr.mxu0 0.0
    %188 = vmatpush1.msra.mxu0 %v67
    %189 = vmatprep.subr.mxu0 0.0
    %190 = vmatpush1.msra.mxu0 %v68
    %191 = vmatprep.subr.mxu0 0.0
    %192 = vmatpush1.msra.mxu0 %v69
    %193 = vmatprep.subr.mxu0 0.0
    %194 = vmatpush1.msra.mxu0 %v70
    %195 = vmatprep.subr.mxu0 0.0
    %196 = vmatpush1.msra.mxu0 %v71
    %197 = vmatprep.subr.mxu0 0.0
    %198 = vmatpush1.msra.mxu0 %v72
    %199 = vmatprep.subr.mxu0 0.0
    %200 = vmatpush1.msra.mxu0 %v73
    %201 = vmatprep.subr.mxu0 0.0
    %202 = vmatpush1.msra.mxu0 %v74
    %203 = vmatprep.subr.mxu0 0.0
    %204 = vmatpush1.msra.mxu0 %v75
    %205 = vmatprep.subr.mxu0 0.0
    %206 = vmatpush1.msra.mxu0 %v76
    %207 = vmatprep.subr.mxu0 0.0
    %208 = vmatpush1.msra.mxu0 %v77
    %209 = vmatprep.subr.mxu0 0.0
    %210 = vmatpush1.msra.mxu0 %v78
    %211 = vmatprep.subr.mxu0 0.0
    %212 = vmatpush1.msra.mxu0 %v79
    %213 = vmatprep.subr.mxu0 0.0
    %214 = vmatpush1.msra.mxu0 %v80
    %215 = vmatprep.subr.mxu0 0.0
    %216 = vmatpush1.msra.mxu0 %v81
    %217 = vmatprep.subr.mxu0 0.0
    %218 = vmatpush1.msra.mxu0 %v82
    %219 = vmatprep.subr.mxu0 0.0
    %220 = vmatpush1.msra.mxu0 %v83
    %221 = vmatprep.subr.mxu0 0.0
    %222 = vmatpush1.msra.mxu0 %v84
    %223 = vmatprep.subr.mxu0 0.0
    %224 = vmatpush1.msra.mxu0 %v85
    %225 = vmatprep.subr.mxu0 0.0
    %226 = vmatpush1.msra.mxu0 %v86
    %227 = vmatprep.subr.mxu0 0.0
    %228 = vmatpush1.msra.mxu0 %v87
    %229 = vmatprep.mubr.f32.mxu0 %v23
    %230 = vmatmul.mubr.f32.gmra.mrb[0].mxu0 %v22
    %v231 = vpop.f32.mrb[0].mxu0
    %v232 = vadd.f32 %v162, %v231
    %v233 = vpop.f32.mrb[0].mxu0
    %234 = vdwg.mxu0
    %vm235 = vcmask 64512
    %236 = vst.msk [vmem:[#allocation2] sm:$0xff] %vm235, %v232
    %v237 = vsel %vm235, %v232, -inf
    %238 = vmax.xlane.f32.xlu0 %v237
    %v239 = vpop.xlane.xlu0 %238
    %v240 = vsub.f32 %v232, %v239
    %v241 = vmul.f32 %v240, 1.442695
    %v242 = vpow.pop %v241
    %v243 = vsel %vm235, %v242, 0.0
    %244 = vadd.xlane.f32.xlu0 %v243
    %v245 = vpop.xlane.xlu0 %244
    %v246 = vlog2.pop %v245
    %v247 = vmul.f32 %v246, 0.6931472
    %v248 = vadd.f32 %v239, %v247
    %v249 = vlaneseq
    %v250 = vand.u32 %v249, 127
    %v251 = vld [vmem:[%s3] sm:$0xff]
    %252 = vset.pattern.permute.xlu0 0
    %253 = vperm.xlu0 %252, %v251
    %v254 = vpop.permute.xlu0 %253
    %vm255 = vcmp.eq.s32.totalorder %v250, %v254
    %v256 = vsel %vm255, %v232, 0.0
    %v257 = vsel %vm235, %v256, 0.0
    %258 = vadd.xlane.f32.xlu0 %v257
    %v259 = vpop.xlane.xlu0 %258
    %v260 = vlaneseq
    %v261 = vshrl.u32 %v260, 7
    %s262 = smul.u32 0, 8
    %v263 = vstv %s262
    %v264 = vadd.s32 %v261, %v263
    %vm265 = vcmp.lt.s32.totalorder %v264, 8
    %v266 = vsub.f32 %v248, %v259
    %v267 = vsel %vm265, %v266, 0.0
    %vm268 = vcmask 7168
    %269 = vst.msk [vmem:[%s5] sm:$0xff] %vm268, %v267
    // Predicated region
    $region18: #{lexicon_forward.1} parent=1 // pred_check
      _
    $region19: #{lexicon_forward.1} parent=1 // pred_check_branch
      %271 = sbr.rel (0) target = $region21
    $region20: #{lexicon_forward.1} parent=1 // pred_region
      %s273 = ssub.s32 128, 128
      %274 = vsyncadd [#allocation3], %s273
      %s276 = sshll.u32 [#allocation2], 4
      %s277 = int_to_ptr.vmem [resolvable:$true] %s276
      %279 = dma.vmem_to_hbm [thread:$0]  %s277, 128, %s4, [#allocation3]
    $region21: #{lexicon_forward.1} parent=1 // pred_fallthru
      _
    // Predicated region
    $region22: #{lexicon_forward.1} parent=1 // pred_check
      _
    $region23: #{lexicon_forward.1} parent=1 // pred_check_branch
      %281 = sbr.rel (0) target = $region25
    $region24: #{lexicon_forward.1} parent=1 // pred_region
      _
    $region25: #{lexicon_forward.1} parent=1 // pred_fallthru
      _
    // Predicated region
    $region26: #{lexicon_forward.1} parent=1 // pred_check
      _
    $region27: #{lexicon_forward.1} parent=1 // pred_check_branch
      %283 = sbr.rel (0) target = $region29
    $region28: #{lexicon_forward.1} parent=1 // pred_region
      %284 = dma.done [#allocation3], 128
    $region29: #{lexicon_forward.1} parent=1 // pred_fallthru
      _
    // Predicated region
    $region30: #{lexicon_forward.1} parent=1 // pred_check
      _
    $region31: #{lexicon_forward.1} parent=1 // pred_check_branch
      %286 = sbr.rel (0) target = $region33
    $region32: #{lexicon_forward.1} parent=1 // pred_region
      _
    $region33: #{lexicon_forward.1} parent=1 // pred_fallthru
      _
    %287 = vsyncpa [#allocation3], 1

</llo_original>
